<compile_context>
chip_gen: v7x
topology: tpu7x:2x2x1
jax: 0.10.0
libtpu: 0.0.40
codegen_flags: <defaults>
</compile_context>

<pallas_src>
import jax
import jax.numpy as jnp
import numpy as np
from jax.experimental import pallas as pl
from jax.experimental.pallas import tpu as pltpu


def _round_up(x, m):
    return ((x + m - 1) // m) * m


def _round_down(x, m):
    return (x // m) * m


# ----------------------------------------------------------------------------
# Kernel: y = x * scale + shift ; out = where(y > 0, y, alpha * y)
#   x_ref : (TR, TL)  rows = (batch, channel) pairs, lanes = spatial positions
#   p_ref : (TR, 3)   packed per-row [scale, shift, alpha] in f32
# Pure VPU work, one load + one store per element, HBM-bandwidth bound.
# ----------------------------------------------------------------------------
def _bnprelu_kernel(x_ref, p_ref, o_ref):
    x = x_ref[...]                         # keep native dtype (f32 or bf16)
    cdt = x.dtype
    scale = p_ref[:, 0:1].astype(cdt)      # (TR, 1) -> broadcast over lanes
    shift = p_ref[:, 1:2].astype(cdt)
    alpha = p_ref[:, 2:3].astype(cdt)
    y = x * scale + shift                  # folded eval-mode BatchNorm
    o_ref[...] = jnp.where(y > 0, y, alpha * y).astype(o_ref.dtype)


# ----------------------------------------------------------------------------
# Wrapper: NCHW in / NCHW out (PyTorch layout), lane-dense (B*C, H*W) inside.
# ----------------------------------------------------------------------------
def bn_prelu(x_nchw, gamma, beta, running_mean, running_var, alpha, eps=1e-3):
    B, C, H, W = x_nchw.shape
    R, L = B * C, H * W
    dt = x_nchw.dtype
    itemsize = jnp.dtype(dt).itemsize

    # NCHW -> (B*C, H*W): pure reshape (no transpose); row r = (b, c) plane.
    x2d = x_nchw.reshape(R, L)

    # Pad lane axis to a multiple of 128 (>=128) so stores are unmasked vst.
    Lp = _round_up(max(L, 128), 128)
    if Lp != L:
        x2d = jnp.pad(x2d, ((0, 0), (0, Lp - L)))

    # Fold eval-mode BatchNorm into per-channel scale/shift; pack with alpha.
    scale = (gamma.astype(jnp.float32)
             / jnp.sqrt(running_var.astype(jnp.float32) + eps))
    shift = beta.astype(jnp.float32) - running_mean.astype(jnp.float32) * scale
    pchan = jnp.stack([scale, shift, alpha.astype(jnp.float32)], axis=1)  # (C,3)
    prow = jnp.tile(pchan, (B, 1))                                        # (R,3)

    # Generation-aware tile byte target + VMEM limit.
    try:
        vmem_cap = int(pltpu.get_tpu_info().vmem_capacity_bytes)
    except Exception:
        vmem_cap = 64 << 20
    if vmem_cap <= (64 << 20):
        # v7x: 3.2 TB/s HBM needs bigger tiles to amortize per-step overhead,
        # but only 64 MiB physical VMEM -> set the scoped limit explicitly.
        tile_target_bytes = 4 << 20
        vmem_limit = 40 << 20
    else:
        # v5e/v6e: ~2 MiB tiles already sit near the HBM roofline and the
        # double-buffered in+out working set stays under the 16/32 MiB
        # default scoped VMEM limit.
        tile_target_bytes = 2 << 20
        vmem_limit = None

    # Lane tile: multiple of 128, capped at 2048 lanes.
    TL = min(Lp, 2048)

    # Row tile: multiple of 8 (or full R when R <= 8), sized from the byte
    # target, and capped so the row axis has >=2 grid steps when R >= 16
    # (keeps both v7x TensorCores busy).
    if R <= 8:
        TR = R
    else:
        TR = max(8, _round_down(tile_target_bytes // (TL * itemsize), 8))
        TR = min(TR, max(8, _round_down(R, 8)))
        if R >= 16:
            TR = min(TR, max(8, _round_down(R // 2, 8)))

    # Grid: lane axis (j) MUST stay innermost so the packed-param block index
    # (i, 0) is constant across the inner loop and its re-DMA is elided.
    grid = (pl.cdiv(R, TR), pl.cdiv(Lp, TL))

    cp_kwargs = dict(dimension_semantics=("parallel", "parallel"))
    if vmem_limit is not None:
        cp_kwargs["vmem_limit_bytes"] = int(vmem_limit)

    out2d = pl.pallas_call(
        _bnprelu_kernel,
        out_shape=jax.ShapeDtypeStruct((R, Lp), dt),
        grid_spec=pltpu.PrefetchScalarGridSpec(
            num_scalar_prefetch=0,
            grid=grid,
            in_specs=[
                pl.BlockSpec((TR, TL), lambda i, j: (i, j)),   # activations
                pl.BlockSpec((TR, 3), lambda i, j: (i, 0)),    # packed params
            ],
            out_specs=pl.BlockSpec((TR, TL), lambda i, j: (i, j)),
        ),
        compiler_params=pltpu.CompilerParams(**cp_kwargs),
        cost_estimate=pl.CostEstimate(
            flops=5 * R * Lp,
            bytes_accessed=itemsize * 2 * R * Lp + 4 * 3 * R,
            transcendentals=0),
    )(x2d, prow)

    if Lp != L:
        out2d = out2d[:, :L]
    return out2d.reshape(B, C, H, W)


# ----------------------------------------------------------------------------
# Pure-JAX reference (mirrors PyTorch BNPReLU.forward in eval mode, f32).
# ----------------------------------------------------------------------------
def reference(x, gamma, beta, running_mean, running_var, alpha, eps=1e-3):
    inv = gamma / jnp.sqrt(running_var + eps)
    y = (x - running_mean[None, :, None, None]) * inv[None, :, None, None] \
        + beta[None, :, None, None]
    return jnp.where(y > 0, y, alpha[None, :, None, None] * y)


if __name__ == "__main__":
    key = jax.random.PRNGKey(0)
    kx, kg, kb, km, kv = jax.random.split(key, 5)

    def make_params(C):
        gamma = jax.random.uniform(kg, (C,), jnp.float32, 0.8, 1.2)
        beta = 0.1 * jax.random.normal(kb, (C,), jnp.float32)
        rm = 0.1 * jax.random.normal(km, (C,), jnp.float32)
        rv = jax.random.uniform(kv, (C,), jnp.float32, 0.5, 1.5)
        a = jnp.full((C,), 0.25, jnp.float32)   # PReLU default init
        return gamma, beta, rm, rv, a

    # Case 1: lane-aligned shape (L = 256), f32.
    B, C, H, W = 2, 16, 16, 16
    gamma, beta, rm, rv, a = make_params(C)
    x = jax.random.normal(kx, (B, C, H, W), jnp.float32)
    out = jax.block_until_ready(bn_prelu(x, gamma, beta, rm, rv, a))
    ref = reference(x, gamma, beta, rm, rv, a)
    assert out.shape == ref.shape == (B, C, H, W)
    err1 = float(jnp.max(jnp.abs(out - ref)))
    assert np.isfinite(err1) and err1 < 1e-5, f"case1 max abs error {err1}"

    # Case 2: ragged spatial (L = 25 -> padded to 128 internally), f32.
    B2, C2, H2, W2 = 2, 4, 5, 5
    g2, b2, m2, v2, a2 = make_params(C2)
    x2 = jax.random.normal(kx, (B2, C2, H2, W2), jnp.float32)
    out2 = jax.block_until_ready(bn_prelu(x2, g2, b2, m2, v2, a2))
    ref2 = reference(x2, g2, b2, m2, v2, a2)
    err2 = float(jnp.max(jnp.abs(out2 - ref2)))
    assert np.isfinite(err2) and err2 < 1e-5, f"case2 max abs error {err2}"

    # Case 3: bf16 activation path (compute stays bf16; looser tolerance).
    xb = x.astype(jnp.bfloat16)
    out3 = jax.block_until_ready(bn_prelu(xb, gamma, beta, rm, rv, a))
    assert out3.dtype == jnp.bfloat16
    err3 = float(jnp.max(jnp.abs(out3.astype(jnp.float32) - ref)))
    assert np.isfinite(err3) and err3 < 0.1, f"case3 max abs error {err3}"

    print("KERNEL_OK")
</pallas_src>

<mosaic_0001>
module attributes {stable_mosaic.version = 11 : i64} {
  func.func @_bnprelu_kernel(%arg0: i32, %arg1: i32, %arg2: memref<16x256xf32, #tpu.memory_space<vmem>>, %arg3: memref<16x3xf32, #tpu.memory_space<vmem>>, %arg4: memref<16x256xf32, #tpu.memory_space<vmem>>) attributes {dimension_semantics = [#tpu.dimension_semantics<parallel>, #tpu.dimension_semantics<parallel>], iteration_bounds = array<i64: 2, 1>, scalar_prefetch = 0 : i64, scratch_operands = 0 : i64, tpu.core_type = #tpu.core_type<tc>, window_params = [{transform_indices = @transform_0, window_bounds = array<i64: 16, 256>}, {transform_indices = @transform_1, window_bounds = array<i64: 16, 3>}, {transform_indices = @transform_2, window_bounds = array<i64: 16, 256>}]} {
    %c0 = arith.constant 0 : index
    %c0_0 = arith.constant 0 : index
    %0 = vector.load %arg2[%c0, %c0_0] : memref<16x256xf32, #tpu.memory_space<vmem>>, vector<16x256xf32>
    %c0_1 = arith.constant 0 : index
    %c0_2 = arith.constant 0 : index
    %1 = vector.load %arg3[%c0_1, %c0_2] : memref<16x3xf32, #tpu.memory_space<vmem>>, vector<16x1xf32>
    %c0_3 = arith.constant 0 : index
    %c1 = arith.constant 1 : index
    %2 = vector.load %arg3[%c0_3, %c1] : memref<16x3xf32, #tpu.memory_space<vmem>>, vector<16x1xf32>
    %c0_4 = arith.constant 0 : index
    %c2 = arith.constant 2 : index
    %3 = vector.load %arg3[%c0_4, %c2] : memref<16x3xf32, #tpu.memory_space<vmem>>, vector<16x1xf32>
    %4 = vector.broadcast %1 : vector<16x1xf32> to vector<16x256xf32>
    %5 = arith.mulf %0, %4 : vector<16x256xf32>
    %6 = vector.broadcast %2 : vector<16x1xf32> to vector<16x256xf32>
    %7 = arith.addf %5, %6 : vector<16x256xf32>
    %cst = arith.constant 0.000000e+00 : f32
    %8 = vector.broadcast %cst : f32 to vector<16x256xf32>
    %9 = arith.cmpf ogt, %7, %8 : vector<16x256xf32>
    %10 = vector.broadcast %3 : vector<16x1xf32> to vector<16x256xf32>
    %11 = arith.mulf %10, %7 : vector<16x256xf32>
    %12 = arith.select %9, %7, %11 : vector<16x256xi1>, vector<16x256xf32>
    %c0_5 = arith.constant 0 : index
    %c0_6 = arith.constant 0 : index
    %13 = vector.load %arg4[%c0_5, %c0_6] : memref<16x256xf32, #tpu.memory_space<vmem>>, vector<16x256xf32>
    tpu.vector_store %arg4[%c0_5, %c0_6], %12 {strides = array<i32>} : memref<16x256xf32, #tpu.memory_space<vmem>>, vector<16x256xf32>,
    return
  }
  func.func @transform_0(%arg0: i32, %arg1: i32) -> (i32, i32) {
    %c0_i32 = arith.constant 0 : i32
    return %arg0, %arg1 : i32, i32
  }
  func.func @transform_1(%arg0: i32, %arg1: i32) -> (i32, i32) {
    %c0_i32 = arith.constant 0 : i32
    %c0_i32_0 = arith.constant 0 : i32
    return %arg0, %c0_i32 : i32, i32
  }
  func.func @transform_2(%arg0: i32, %arg1: i32) -> (i32, i32) {
    %c0_i32 = arith.constant 0 : i32
    return %arg0, %arg1 : i32, i32
  }
}

</mosaic_0001>

<llo_original>
// kernel: tpu_custom_call.1
$region0: #{tpu_custom_call.1}
  #allocation0 [shape = 'u32[]', space=smem, size = 0x4, offset = 0x4, fixed_abs, tag = 'smem constant byte address 0x4 - core index']
  #allocation1 [shape = 'u32[144,128]{1,0:T(1,128)}', space=vmem, size = 0x12000, scoped, tag = 'internal scratch']
  %s0 = inlined_call_operand.hbm [shape: f32[32,256], index: 0, kind: input, shape index: {}]
  %s1 = inlined_call_operand.vmem [shape: f32[32,3], index: 1, kind: input, shape index: {}]
  %s2 = inlined_call_operand.hbm [shape: f32[32,256], index: 2, kind: output, shape index: {}]
  %s3 = sld [smem:[#allocation0]]
  $region45: #{tpu_custom_call.1} parent=0
    _
  %s5 = ssub.s32 1, %s3
  %s6 = scalar_select 0, %s5, %s3
  $region1: #{tpu_custom_call.1} parent=0
    #allocation2 [shape = 'u8[32768]{0}', space=vmem, size = 0x8000, scoped, tag = 'input window, operand 0']
    #allocation3 [shape = 's32[2]{0}', space=sflag, size = 0x8, scoped, tag = 'scoped memory for tpu_custom_call.1']
    #allocation4 [shape = 's32[2]{0}', space=sflag, size = 0x8, scoped, tag = 'scoped memory for tpu_custom_call.1']
    #allocation5 [shape = 'u8[32768]{0}', space=vmem, size = 0x8000, scoped, tag = 'output window, operand 0']
    %7 = vsyncpa [#allocation3], 0
    %s8 = scalar_lea.sflag [#allocation3], 1
    %9 = vsyncpa %s8, 0
    %10 = vsyncpa [#allocation4], 0
    %s11 = scalar_lea.sflag [#allocation4], 1
    %12 = vsyncpa %s11, 0
    loop: start=0, step=1, limit=4
    $region2: #{tpu_custom_call.1} parent=1 // loop_pre_header
      _
    $region3: #{tpu_custom_call.1} parent=1 // loop_header
      %s14 = sphi 0, %s18
      %p15 = scmp.ge.s32.totalorder %s14, 4
      %s21 = sphi 0, %s33
      %s22 = sphi 0, %s29
      %s23 = sphi 0, %s21
      %s24 = sphi 0, %s22
      %s25 = sphi 0, %s23
      %s26 = sphi 0, %s24
      %s38 = sphi 0, %s40
      %s41 = sphi 0, %s38
      %s42 = sphi 0, %s41
      %s58 = sphi 0, %s42
      %s64 = sphi 0, %s66
      %s67 = sphi 0, %s64
      %s68 = sphi 0, %s67
      %s84 = sphi 0, %s68
      %s92 = sphi 0, %s94
      %s95 = sphi 0, %s92
      %s96 = sphi 0, %s95
      %s112 = sphi 0, %s96
    $region4: #{tpu_custom_call.1} parent=1 // loop_header_branch
      %17 = sbr.rel (%p15) target = $region8
    $region5: #{tpu_custom_call.1} parent=1 // loop_body
      %s19 = ssub.s32 %s14, 1
      %s20 = ssub.s32 %s14, 2
      %s27 = sadd.s32 1, %s22
      %p28 = scmp.ge.s32.totalorder %s27, 1
      %s29 = scalar_select %p28, 0, %s27
      %s30 = sadd.s32 1, %s21
      %s31 = scalar_select %p28, %s30, %s21
      %p32 = scmp.ge.s32.totalorder %s31, 2
      %s33 = scalar_select %p32, 0, %s31
      %s34 = ssub.s32 %s21, %s33
      %s35 = ssub.s32 %s22, %s29
      %s36 = sor.u32 %s34, %s35
      %p37 = scmp.eq.s32.totalorder %s36, 0
      %s39 = sadd.s32 %s38, 1
      %s40 = scalar_select %p37, %s38, %s39
      %p43 = pneg %p37
      %p44 = scmp.eq.s32.totalorder %s14, 1
      %p45 = por %p43, %p44
      %p46 = scmp.ne.s32.totalorder %s38, %s41
      %p47 = scmp.eq.s32.totalorder %s14, 0
      %p48 = por %p46, %p47
      %p49 = scmp.ne.s32.totalorder %s38, %s41
      %p50 = scmp.eq.s32.totalorder %s19, 1
      %p51 = por %p49, %p50
      %p52 = scmp.ne.s32.totalorder %s41, %s42
      %p53 = scmp.eq.s32.totalorder %s19, 0
      %p54 = por %p52, %p53
      %p55 = scmp.ne.s32.totalorder %s41, %s42
      %p56 = scmp.eq.s32.totalorder %s20, 1
      %p57 = por %p55, %p56
      %p59 = scmp.ne.s32.totalorder %s42, %s58
      %p60 = scmp.eq.s32.totalorder %s20, 0
      %p61 = por %p59, %p60
      %s62 = ssub.s32 %s21, %s33
      %p63 = scmp.eq.s32.totalorder %s62, 0
      %s65 = sadd.s32 %s64, 1
      %s66 = scalar_select %p63, %s64, %s65
      %p69 = pneg %p63
      %p70 = scmp.eq.s32.totalorder %s14, 1
      %p71 = por %p69, %p70
      %p72 = scmp.ne.s32.totalorder %s64, %s67
      %p73 = scmp.eq.s32.totalorder %s14, 0
      %p74 = por %p72, %p73
      %p75 = scmp.ne.s32.totalorder %s64, %s67
      %p76 = scmp.eq.s32.totalorder %s19, 1
      %p77 = por %p75, %p76
      %p78 = scmp.ne.s32.totalorder %s67, %s68
      %p79 = scmp.eq.s32.totalorder %s19, 0
      %p80 = por %p78, %p79
      %p81 = scmp.ne.s32.totalorder %s67, %s68
      %p82 = scmp.eq.s32.totalorder %s20, 1
      %p83 = por %p81, %p82
      %p85 = scmp.ne.s32.totalorder %s68, %s84
      %p86 = scmp.eq.s32.totalorder %s20, 0
      %p87 = por %p85, %p86
      %s88 = ssub.s32 %s21, %s33
      %s89 = ssub.s32 %s22, %s29
      %s90 = sor.u32 %s88, %s89
      %p91 = scmp.eq.s32.totalorder %s90, 0
      %s93 = sadd.s32 %s92, 1
      %s94 = scalar_select %p91, %s92, %s93
      %p97 = pneg %p91
      %p98 = scmp.eq.s32.totalorder %s14, 1
      %p99 = por %p97, %p98
      %p100 = scmp.ne.s32.totalorder %s92, %s95
      %p101 = scmp.eq.s32.totalorder %s14, 0
      %p102 = por %p100, %p101
      %p103 = scmp.ne.s32.totalorder %s92, %s95
      %p104 = scmp.eq.s32.totalorder %s19, 1
      %p105 = por %p103, %p104
      %p106 = scmp.ne.s32.totalorder %s95, %s96
      %p107 = scmp.eq.s32.totalorder %s19, 0
      %p108 = por %p106, %p107
      %p109 = scmp.ne.s32.totalorder %s95, %s96
      %p110 = scmp.eq.s32.totalorder %s20, 1
      %p111 = por %p109, %p110
      %p113 = scmp.ne.s32.totalorder %s96, %s112
      %p114 = scmp.eq.s32.totalorder %s20, 0
      %p115 = por %p113, %p114
      %p116 = scmp.le.s32.totalorder 1, %s14
      %p117 = scmp.lt.s32.totalorder %s14, 3
      %p118 = pnand %p116, %p117
      %p119 = pneg %p118
      // Predicated region
      $region9: #{tpu_custom_call.1} parent=5 // pred_check
        _
      $region10: #{tpu_custom_call.1} parent=5 // pred_check_branch
        %121 = sbr.rel (%p118) target = $region12
      $region11: #{tpu_custom_call.1} parent=5 // pred_region
        %s122 = ssub.s32 %s14, 1
      $region12: #{tpu_custom_call.1} parent=5 // pred_fallthru
        _
      %p123 = scmp.lt.s32.totalorder %s14, 2
      // Predicated region
      $region13: #{tpu_custom_call.1} parent=5 // pred_check
        %p124 = pneg %p123
      $region14: #{tpu_custom_call.1} parent=5 // pred_check_branch
        %126 = sbr.rel (%p124) target = $region16
      $region15: #{tpu_custom_call.1} parent=5 // pred_region
        // Predicated region
        $region17: #{tpu_custom_call.1} parent=15 // pred_check
          %p127 = pneg %p48
        $region18: #{tpu_custom_call.1} parent=15 // pred_check_branch
          %129 = sbr.rel (%p127) target = $region20
        $region19: #{tpu_custom_call.1} parent=15 // pred_region
          %s130 = sand.u32 %s38, 1
          %s131 = scalar_lea.sflag [#allocation3], %s130
          %s132 = sand.u32 %s38, 1
          %s133 = smul.addr %s132, 32
          %s134 = scalar_lea.vmem [#allocation2], %s133
          %s135 = smul.u32 2, %s21
          %s136 = smul.u32 2, %s22
          %s138 = ssub.s32 512, 512
          %139 = vsyncadd %s131, %s138
          %s140 = smul.addr %s135, 2
          %s141 = sadd.s32 %s136, %s140
          %s142 = smul.addr %s141, 128
          %s143 = scalar_lea.hbm %s0, %s142
          %s144 = sshll.u32 %s134, 4
          %s145 = int_to_ptr.vmem [resolvable:$true] %s144
          %150 = dma.hbm_to_vmem [thread:$0]  %s143, 512, %s145, %s131, 256, 256, 16
        $region20: #{tpu_custom_call.1} parent=15 // pred_fallthru
          _
        // Predicated region
        $region21: #{tpu_custom_call.1} parent=15 // pred_check
          %p151 = pneg %p74
        $region22: #{tpu_custom_call.1} parent=15 // pred_check_branch
          %153 = sbr.rel (%p151) target = $region24
        $region23: #{tpu_custom_call.1} parent=15 // pred_region
          %s154 = smul.u32 2, %s21
          %p155 = scmp.lt.s32.totalorder %s154, 3
          %s156 = scalar_select %p155, %s154, 3
          %s157 = smul.addr %s156, 8
          %s158 = scalar_lea.vmem %s1, %s157
          %s159 = smul.u32 2, %s21
        $region24: #{tpu_custom_call.1} parent=15 // pred_fallthru
          _
      $region16: #{tpu_custom_call.1} parent=5 // pred_fallthru
        _
      %p160 = scmp.le.s32.totalorder 1, %s14
      %p161 = scmp.lt.s32.totalorder %s14, 3
      %p162 = pnand %p160, %p161
      %p163 = pneg %p162
      // Predicated region
      $region25: #{tpu_custom_call.1} parent=5 // pred_check
        _
      $region26: #{tpu_custom_call.1} parent=5 // pred_check_branch
        %165 = sbr.rel (%p162) target = $region28
      $region27: #{tpu_custom_call.1} parent=5 // pred_region
        %s166 = ssub.s32 %s14, 1
        %s167 = sand.u32 %s41, 1
        %s168 = scalar_lea.sflag [#allocation3], %s167
        %s169 = sand.u32 %s41, 1
        %s170 = smul.addr %s169, 32
        %s171 = scalar_lea.vmem [#allocation2], %s170
        // Predicated region
        $region29: #{tpu_custom_call.1} parent=27 // pred_check
          %p172 = pneg %p54
        $region30: #{tpu_custom_call.1} parent=27 // pred_check_branch
          %174 = sbr.rel (%p172) target = $region32
        $region31: #{tpu_custom_call.1} parent=27 // pred_region
          %175 = dma.done %s168, 512
        $region32: #{tpu_custom_call.1} parent=27 // pred_fallthru
          _
        %s176 = sand.u32 %s41, 1
        %s177 = scalar_lea.sflag [#allocation3], %s176
        %s178 = sand.u32 %s41, 1
        %s179 = smul.addr %s178, 32
        %s180 = scalar_lea.vmem [#allocation2], %s179
        %p181 = pneg %p54
        %p182 = pneg %p51
        %s183 = smul.u32 2, %s23
        %p184 = scmp.lt.s32.totalorder %s183, 3
        %s185 = scalar_select %p184, %s183, 3
        %s186 = smul.addr %s185, 8
        %s187 = scalar_lea.vmem %s1, %s186
        %p188 = pneg %p80
        %p189 = pneg %p77
        %p190 = pneg %p108
        %p191 = pneg %p105
        %s192 = sand.u32 %s95, 1
        %s193 = scalar_lea.sflag [#allocation4], %s192
        %s194 = sand.u32 %s95, 1
        %s195 = smul.addr %s194, 32
        %s196 = scalar_lea.vmem [#allocation5], %s195
        %s197 = smul.u32 2, %s23
        %s198 = smul.u32 2, %s24
        %s199 = smul.u32 2, %s23
        %p200 = scmp.lt.s32.totalorder %s199, 3
        %s201 = scalar_select %p200, %s199, 3
        %s202 = smul.addr %s201, 8
        %s203 = scalar_lea.vmem %s1, %s202
        %s204 = smul.u32 2, %s23
        %s205 = smul.u32 2, %s23
        %s206 = smul.u32 2, %s24
        %v207 = vld [vmem:[%s171] sm:$0xff]
        %v208 = vld [vmem:[%s171 + $0x8] sm:$0xff]
        %v209 = vld [vmem:[%s171 + $0x10] sm:$0xff]
        %v210 = vld [vmem:[%s171 + $0x18] sm:$0xff]
        %v211 = vld [vmem:[%s203] sm:$0xff]
        %v212 = vld [vmem:[%s203 + $0x8] sm:$0xff]
        %214 = vset.pattern.permute.xlu0 0
        %215 = vperm.xlu0 %214, %v211
        %v216 = vpop.permute.xlu0 %215
        %219 = vset.pattern.permute.xlu0 0
        %220 = vperm.xlu0 %219, %v212
        %v221 = vpop.permute.xlu0 %220
        %v223 = vmul.f32 %v207, %v216
        %v224 = vmul.f32 %v208, %v216
        %v225 = vmul.f32 %v209, %v221
        %v226 = vmul.f32 %v210, %v221
        %227 = vset.pattern.permute.xlu0 1
        %228 = vperm.xlu0 %227, %v211
        %v229 = vpop.permute.xlu0 %228
        %231 = vset.pattern.permute.xlu0 1
        %232 = vperm.xlu0 %231, %v212
        %v233 = vpop.permute.xlu0 %232
        %v235 = vadd.f32 %v223, %v229
        %v236 = vadd.f32 %v224, %v229
        %v237 = vadd.f32 %v225, %v233
        %v238 = vadd.f32 %v226, %v233
        %vm239 = vcmp.gt.f32.partialorder %v235, 0.0
        %vm240 = vcmp.gt.f32.partialorder %v236, 0.0
        %vm241 = vcmp.gt.f32.partialorder %v237, 0.0
        %vm242 = vcmp.gt.f32.partialorder %v238, 0.0
        %243 = vset.pattern.permute.xlu0 2
        %244 = vperm.xlu0 %243, %v211
        %v245 = vpop.permute.xlu0 %244
        %247 = vset.pattern.permute.xlu0 2
        %248 = vperm.xlu0 %247, %v212
        %v249 = vpop.permute.xlu0 %248
        %v251 = vmul.f32 %v245, %v235
        %v252 = vmul.f32 %v245, %v236
        %v253 = vmul.f32 %v249, %v237
        %v254 = vmul.f32 %v249, %v238
        %v255 = vsel %vm239, %v235, %v251
        %v256 = vsel %vm240, %v236, %v252
        %v257 = vsel %vm241, %v237, %v253
        %v258 = vsel %vm242, %v238, %v254
        %259 = vst [vmem:[%s196] sm:$0xff] %v255
        %260 = vst [vmem:[%s196 + $0x8] sm:$0xff] %v256
        %261 = vst [vmem:[%s196 + $0x10] sm:$0xff] %v257
        %262 = vst [vmem:[%s196 + $0x18] sm:$0xff] %v258
        %s263 = sand.u32 %s95, 1
        %s264 = scalar_lea.sflag [#allocation4], %s263
        %s265 = sand.u32 %s95, 1
        %s266 = smul.addr %s265, 32
        %s267 = scalar_lea.vmem [#allocation5], %s266
        // Predicated region
        $region33: #{tpu_custom_call.1} parent=27 // pred_check
          %p268 = pneg %p105
        $region34: #{tpu_custom_call.1} parent=27 // pred_check_branch
          %270 = sbr.rel (%p268) target = $region36
        $region35: #{tpu_custom_call.1} parent=27 // pred_region
          %s271 = smul.u32 2, %s23
          %s272 = smul.u32 2, %s24
          %s274 = ssub.s32 512, 512
          %275 = vsyncadd %s264, %s274
          %s276 = smul.addr %s271, 2
          %s277 = sadd.s32 %s272, %s276
          %s278 = smul.addr %s277, 128
          %s279 = scalar_lea.hbm %s2, %s278
          %s280 = sshll.u32 %s267, 4
          %s281 = int_to_ptr.vmem [resolvable:$true] %s280
          %286 = dma.vmem_to_hbm [thread:$0]  %s281, 512, %s279, %s264, 256, 256, 16
        $region36: #{tpu_custom_call.1} parent=27 // pred_fallthru
          _
      $region28: #{tpu_custom_call.1} parent=5 // pred_fallthru
        _
      %p287 = scmp.le.s32.totalorder 2, %s14
      // Predicated region
      $region37: #{tpu_custom_call.1} parent=5 // pred_check
        %p288 = pneg %p287
      $region38: #{tpu_custom_call.1} parent=5 // pred_check_branch
        %290 = sbr.rel (%p288) target = $region40
      $region39: #{tpu_custom_call.1} parent=5 // pred_region
        %s291 = ssub.s32 %s14, 2
        // Predicated region
        $region41: #{tpu_custom_call.1} parent=39 // pred_check
          %p292 = pneg %p111
        $region42: #{tpu_custom_call.1} parent=39 // pred_check_branch
          %294 = sbr.rel (%p292) target = $region44
        $region43: #{tpu_custom_call.1} parent=39 // pred_region
          %s295 = sand.u32 %s96, 1
          %s296 = scalar_lea.sflag [#allocation4], %s295
          %s297 = sand.u32 %s96, 1
          %s298 = smul.addr %s297, 32
          %s299 = scalar_lea.vmem [#allocation5], %s298
          %300 = dma.done %s296, 512
        $region44: #{tpu_custom_call.1} parent=39 // pred_fallthru
          _
      $region40: #{tpu_custom_call.1} parent=5 // pred_fallthru
        _
    $region6: #{tpu_custom_call.1} parent=1 // loop_footer
      %s18 = sadd.s32 1, %s14
    $region7: #{tpu_custom_call.1} parent=1 // loop_footer_branch
      %13 = sbr.rel target = $region3
    $region8: #{tpu_custom_call.1} parent=1 // loop_exit
      _
    %301 = vsyncpa [#allocation3], 1
    %s302 = scalar_lea.sflag [#allocation3], 1
    %303 = vsyncpa %s302, 1
    %304 = vsyncpa [#allocation4], 1
    %s305 = scalar_lea.sflag [#allocation4], 1
    %306 = vsyncpa %s305, 1

</llo_original>
